<compile_context>
chip_gen: v6e
topology: v6e:2x2x1
jax: 0.10.0
libtpu: 0.0.40
codegen_flags: <defaults>
</compile_context>

<pallas_src>
import jax
import jax.numpy as jnp
from jax.experimental import pallas as pl
from jax.experimental.pallas import tpu as pltpu


def _top1_loss_kernel(rows_ref, diag_blk_ref, out_ref, acc_ref):
    i = pl.program_id(0)
    tm, n = rows_ref.shape  # static block shape: (TM, N)

    @pl.when(i == 0)
    def _init():
        acc_ref[...] = jnp.zeros_like(acc_ref)

    # Compute in f32 regardless of input dtype (v5e has no bf16 VPU/EUP).
    x = rows_ref[...].astype(jnp.float32)        # (TM, N) row tile
    xd = diag_blk_ref[...].astype(jnp.float32)   # (TM, TM) block containing the diagonal

    # Extract the diagonal from the small (TM, TM) block only.
    r = jax.lax.broadcasted_iota(jnp.int32, (tm, tm), 0)
    c = jax.lax.broadcasted_iota(jnp.int32, (tm, tm), 1)
    diag = jnp.sum(jnp.where(r == c, xd, 0.0), axis=1, keepdims=True)  # (TM, 1)

    # diff = -(diag.expand_as(logit) - logit) = logit - diag
    diff = x - diag

    # sigmoid(a) + sigmoid(b) = 0.5*(tanh(a/2) + tanh(b/2)) + 1  (one EUP op per term)
    t = jnp.tanh(0.5 * diff) + jnp.tanh(0.5 * (x * x))
    acc_ref[...] += jnp.sum(t)

    @pl.when(i == pl.num_programs(0) - 1)
    def _finalize():
        inv = 1.0 / (float(n) * float(n))  # static
        out_ref[...] = acc_ref[...] * (0.5 * inv) + 1.0


def _pick_row_tile(n: int, itemsize: int) -> int:
    """Largest 128-multiple row tile that divides N and keeps one buffer <= ~4 MiB."""
    budget_elems = (4 << 20) // itemsize
    divisors = [tm for tm in (512, 256, 128) if tm < n and n % tm == 0]
    for tm in divisors:
        if tm * n <= budget_elems:
            return tm
    if divisors:
        return divisors[-1]  # smallest 128-multiple divisor (huge N); still double-buffers
    return n                 # small N (or N not a multiple of 128): single block


def top1_loss(logit: jax.Array) -> jax.Array:
    """TOP1 loss for a square (N, N) score matrix. Returns a scalar."""
    assert logit.ndim == 2 and logit.shape[0] == logit.shape[1], "logit must be square"
    n = logit.shape[0]
    itemsize = jnp.dtype(logit.dtype).itemsize
    tm = _pick_row_tile(n, itemsize)
    grid = (n // tm,)

    tile_bytes = (tm * n + tm * tm) * itemsize
    vmem_limit = int(min(60 << 20, max(32 << 20, 6 * tile_bytes)))

    cost = pl.CostEstimate(
        flops=6 * n * n,
        transcendentals=2 * n * n,
        bytes_accessed=n * n * itemsize + (n // tm) * tm * tm * itemsize + 4,
    )

    out = pl.pallas_call(
        _top1_loss_kernel,
        out_shape=jax.ShapeDtypeStruct((1, 1), jnp.float32),
        grid=grid,
        in_specs=[
            pl.BlockSpec((tm, n), lambda i: (i, 0)),    # row tile (native dtype, no wrapper cast)
            pl.BlockSpec((tm, tm), lambda i: (i, i)),   # diagonal block for these rows
        ],
        out_specs=pl.BlockSpec((1, 1), lambda i: (0, 0)),
        scratch_shapes=[pltpu.VMEM((1, 1), jnp.float32)],
        compiler_params=pltpu.CompilerParams(
            dimension_semantics=("arbitrary",),
            vmem_limit_bytes=vmem_limit,
        ),
        cost_estimate=cost,
    )(logit, logit)
    return out[0, 0]


def _top1_loss_ref(logit: jax.Array) -> jax.Array:
    """Pure-JAX reference mirroring the PyTorch forward exactly."""
    diag = jnp.diag(logit).reshape(-1, 1)
    diff = -(diag - logit)
    return jnp.mean(jax.nn.sigmoid(diff)) + jnp.mean(jax.nn.sigmoid(logit ** 2))


if __name__ == "__main__":
    key = jax.random.PRNGKey(0)
    # N=64 exercises the single-block path; N=256 exercises the tiled (TM=128, 2-step
    # grid) path with cross-step accumulation.
    for n in (64, 256):
        k = jax.random.fold_in(key, n)
        logit = jax.random.normal(k, (n, n), dtype=jnp.float32)

        loss = jax.block_until_ready(top1_loss(logit))
        ref = jax.block_until_ready(_top1_loss_ref(logit))

        assert jnp.allclose(loss, ref, atol=2e-5, rtol=2e-5), (n, loss, ref)
    print("KERNEL_OK")
</pallas_src>

<mosaic_0001>
module attributes {stable_mosaic.version = 11 : i64} {
  func.func @_top1_loss_kernel(%arg0: i32, %arg1: memref<64x64xf32, #tpu.memory_space<vmem>>, %arg2: memref<64x64xf32, #tpu.memory_space<vmem>>, %arg3: memref<1x1xf32, #tpu.memory_space<vmem>>, %arg4: memref<1x1xf32, #tpu.memory_space<vmem>>) attributes {dimension_semantics = [#tpu.dimension_semantics<arbitrary>], iteration_bounds = array<i64: 1>, scalar_prefetch = 0 : i64, scratch_operands = 1 : i64, tpu.core_type = #tpu.core_type<tc>, window_params = [{transform_indices = @transform_0, window_bounds = array<i64: 64, 64>}, {transform_indices = @transform_1, window_bounds = array<i64: 64, 64>}, {pipeline_mode = #tpu.pipeline_mode<synchronous>, transform_indices = @transform_2, window_bounds = array<i64: 1, 1>}]} {
    %c0_i32 = arith.constant 0 : i32
    %0 = arith.cmpi eq, %arg0, %c0_i32 : i32
    %1 = arith.extui %0 : i1 to i32
    %c0_i32_0 = arith.constant 0 : i32
    %2 = arith.cmpi ne, %1, %c0_i32_0 : i32
    scf.if %2 {
      %cst_14 = arith.constant 0.000000e+00 : f32
      %33 = vector.broadcast %cst_14 : f32 to vector<1x1xf32>
      %c0_15 = arith.constant 0 : index
      %c0_16 = arith.constant 0 : index
      %34 = vector.load %arg4[%c0_15, %c0_16] : memref<1x1xf32, #tpu.memory_space<vmem>>, vector<1x1xf32>
      tpu.vector_store %arg4[%c0_15, %c0_16], %33 {strides = array<i32>} : memref<1x1xf32, #tpu.memory_space<vmem>>, vector<1x1xf32>,
    } else {
    }
    %c0 = arith.constant 0 : index
    %c0_1 = arith.constant 0 : index
    %3 = vector.load %arg1[%c0, %c0_1] : memref<64x64xf32, #tpu.memory_space<vmem>>, vector<64x64xf32>
    %c0_2 = arith.constant 0 : index
    %c0_3 = arith.constant 0 : index
    %4 = vector.load %arg2[%c0_2, %c0_3] : memref<64x64xf32, #tpu.memory_space<vmem>>, vector<64x64xf32>
    %5 = tpu.iota {dimensions = array<i32: 0>} : vector<64x64xi32>
    %6 = tpu.iota {dimensions = array<i32: 1>} : vector<64x64xi32>
    %7 = arith.cmpi eq, %5, %6 : vector<64x64xi32>
    %cst = arith.constant 0.000000e+00 : f32
    %8 = vector.broadcast %cst : f32 to vector<64x64xf32>
    %9 = arith.select %7, %4, %8 : vector<64x64xi1>, vector<64x64xf32>
    %cst_4 = arith.constant dense<0.000000e+00> : vector<64xf32>
    %10 = vector.multi_reduction <add>, %9, %cst_4 [1] : vector<64x64xf32> to vector<64xf32>
    %11 = vector.shape_cast %10 : vector<64xf32> to vector<64x1xf32>
    %12 = vector.broadcast %11 : vector<64x1xf32> to vector<64x64xf32>
    %13 = arith.subf %3, %12 : vector<64x64xf32>
    %cst_5 = arith.constant 5.000000e-01 : f32
    %14 = vector.broadcast %cst_5 : f32 to vector<64x64xf32>
    %15 = arith.mulf %14, %13 : vector<64x64xf32>
    %16 = math.tanh %15 : vector<64x64xf32>
    %17 = arith.mulf %3, %3 : vector<64x64xf32>
    %cst_6 = arith.constant 5.000000e-01 : f32
    %18 = vector.broadcast %cst_6 : f32 to vector<64x64xf32>
    %19 = arith.mulf %18, %17 : vector<64x64xf32>
    %20 = math.tanh %19 : vector<64x64xf32>
    %21 = arith.addf %16, %20 : vector<64x64xf32>
    %c0_7 = arith.constant 0 : index
    %c0_8 = arith.constant 0 : index
    %22 = vector.load %arg4[%c0_7, %c0_8] : memref<1x1xf32, #tpu.memory_space<vmem>>, vector<1x1xf32>
    %23 = vector.shape_cast %21 : vector<64x64xf32> to vector<1x64x64xf32>
    %cst_9 = arith.constant dense<0.000000e+00> : vector<1xf32>
    %24 = vector.multi_reduction <add>, %23, %cst_9 [1, 2] : vector<1x64x64xf32> to vector<1xf32>
    %25 = vector.shape_cast %24 : vector<1xf32> to vector<1x1x1xf32>
    %26 = vector.extract %25[0, 0, 0] : f32 from vector<1x1x1xf32>
    %27 = vector.broadcast %26 : f32 to vector<1x1xf32>
    %28 = arith.addf %22, %27 : vector<1x1xf32>
    %c0_10 = arith.constant 0 : index
    %c0_11 = arith.constant 0 : index
    %29 = vector.load %arg4[%c0_10, %c0_11] : memref<1x1xf32, #tpu.memory_space<vmem>>, vector<1x1xf32>
    tpu.vector_store %arg4[%c0_10, %c0_11], %28 {strides = array<i32>} : memref<1x1xf32, #tpu.memory_space<vmem>>, vector<1x1xf32>,
    %c0_i32_12 = arith.constant 0 : i32
    %30 = arith.cmpi eq, %arg0, %c0_i32_12 : i32
    %31 = arith.extui %30 : i1 to i32
    %c0_i32_13 = arith.constant 0 : i32
    %32 = arith.cmpi ne, %31, %c0_i32_13 : i32
    scf.if %32 {
      %c0_14 = arith.constant 0 : index
      %c0_15 = arith.constant 0 : index
      %33 = vector.load %arg4[%c0_14, %c0_15] : memref<1x1xf32, #tpu.memory_space<vmem>>, vector<1x1xf32>
      %cst_16 = arith.constant 1.22070313E-4 : f32
      %34 = vector.broadcast %cst_16 : f32 to vector<1x1xf32>
      %35 = arith.mulf %33, %34 : vector<1x1xf32>
      %cst_17 = arith.constant 1.000000e+00 : f32
      %36 = vector.broadcast %cst_17 : f32 to vector<1x1xf32>
      %37 = arith.addf %35, %36 : vector<1x1xf32>
      %c0_18 = arith.constant 0 : index
      %c0_19 = arith.constant 0 : index
      %38 = vector.load %arg3[%c0_18, %c0_19] : memref<1x1xf32, #tpu.memory_space<vmem>>, vector<1x1xf32>
      tpu.vector_store %arg3[%c0_18, %c0_19], %37 {strides = array<i32>} : memref<1x1xf32, #tpu.memory_space<vmem>>, vector<1x1xf32>,
    } else {
    }
    return
  }
  func.func @transform_0(%arg0: i32) -> (i32, i32) {
    %c0_i32 = arith.constant 0 : i32
    %c0_i32_0 = arith.constant 0 : i32
    return %arg0, %c0_i32 : i32, i32
  }
  func.func @transform_1(%arg0: i32) -> (i32, i32) {
    %c0_i32 = arith.constant 0 : i32
    return %arg0, %arg0 : i32, i32
  }
  func.func @transform_2(%arg0: i32) -> (i32, i32) {
    %c0_i32 = arith.constant 0 : i32
    %c0_i32_0 = arith.constant 0 : i32
    %c0_i32_1 = arith.constant 0 : i32
    return %c0_i32, %c0_i32_0 : i32, i32
  }
}

</mosaic_0001>

<llo_original>
// kernel: tpu_custom_call.1
$region0: #{tpu_custom_call.1}
  #allocation0 [shape = 'u32[]', space=smem, size = 0x4, offset = 0x4, fixed_abs, tag = 'smem constant byte address 0x4 - core index']
  #allocation1 [shape = 'u32[144,128]{1,0:T(1,128)}', space=vmem, size = 0x12000, scoped, tag = 'internal scratch']
  #allocation2 [shape = 'f32[1,1]{1,0:T(1,128)}', space=vmem, size = 0x200, scoped, tag = 'scratch operand']
  %s0 = inlined_call_operand.hbm [shape: f32[64,64], index: 0, kind: input, shape index: {}]
  %s1 = inlined_call_operand.hbm [shape: f32[64,64], index: 1, kind: input, shape index: {}]
  %s2 = inlined_call_operand.hbm [shape: f32[1,1], index: 2, kind: output, shape index: {}]
  %s3 = sld [smem:[#allocation0]]
  $region34: #{tpu_custom_call.1} parent=0
    _
  %s5 = ssub.s32 1, %s3
  %s6 = scalar_select 0, %s5, %s3
  $region1: #{tpu_custom_call.1} parent=0
    #allocation3 [shape = 'u8[32768]{0}', space=vmem, size = 0x8000, scoped, tag = 'input window, operand 0, single buffered']
    #allocation4 [shape = 's32[1]{0}', space=sflag, size = 0x4, scoped, tag = 'scoped memory for tpu_custom_call.1']
    #allocation5 [shape = 's32[1]{0}', space=sflag, size = 0x4, scoped, tag = 'scoped memory for tpu_custom_call.1']
    #allocation6 [shape = 'u8[32768]{0}', space=vmem, size = 0x8000, scoped, tag = 'input window, operand 1, single buffered']
    #allocation7 [shape = 's32[1]{0}', space=sflag, size = 0x4, scoped, tag = 'scoped memory for tpu_custom_call.1']
    #allocation8 [shape = 'u8[512]{0}', space=vmem, size = 0x400, scoped, tag = 'output window, operand 0, single buffered']
    %7 = vsyncpa [#allocation4], 0
    %8 = vsyncpa [#allocation7], 0
    %9 = vsyncpa [#allocation5], 0
    // Predicated region
    $region2: #{tpu_custom_call.1} parent=1 // pred_check
      _
    $region3: #{tpu_custom_call.1} parent=1 // pred_check_branch
      %11 = sbr.rel (0) target = $region5
    $region4: #{tpu_custom_call.1} parent=1 // pred_region
      %s13 = ssub.s32 1024, 1024
      %14 = vsyncadd [#allocation4], %s13
      %s15 = sshll.u32 [#allocation3], 4
      %s16 = int_to_ptr.vmem [resolvable:$true] %s15
      %21 = dma.hbm_to_vmem [thread:$0]  %s0, 1024, %s16, [#allocation4], 128, 128, 8
    $region5: #{tpu_custom_call.1} parent=1 // pred_fallthru
      _
    // Predicated region
    $region6: #{tpu_custom_call.1} parent=1 // pred_check
      _
    $region7: #{tpu_custom_call.1} parent=1 // pred_check_branch
      %23 = sbr.rel (0) target = $region9
    $region8: #{tpu_custom_call.1} parent=1 // pred_region
      %s25 = ssub.s32 1024, 1024
      %26 = vsyncadd [#allocation7], %s25
      %s27 = sshll.u32 [#allocation6], 4
      %s28 = int_to_ptr.vmem [resolvable:$true] %s27
      %33 = dma.hbm_to_vmem [thread:$0]  %s1, 1024, %s28, [#allocation7], 128, 128, 8
    $region9: #{tpu_custom_call.1} parent=1 // pred_fallthru
      _
    // Predicated region
    $region10: #{tpu_custom_call.1} parent=1 // pred_check
      _
    $region11: #{tpu_custom_call.1} parent=1 // pred_check_branch
      %35 = sbr.rel (0) target = $region13
    $region12: #{tpu_custom_call.1} parent=1 // pred_region
      %36 = dma.done [#allocation4], 1024
    $region13: #{tpu_custom_call.1} parent=1 // pred_fallthru
      _
    // Predicated region
    $region14: #{tpu_custom_call.1} parent=1 // pred_check
      _
    $region15: #{tpu_custom_call.1} parent=1 // pred_check_branch
      %38 = sbr.rel (0) target = $region17
    $region16: #{tpu_custom_call.1} parent=1 // pred_region
      %39 = dma.done [#allocation7], 1024
    $region17: #{tpu_custom_call.1} parent=1 // pred_fallthru
      _
    %p40 = scmp.eq.s32.totalorder 0, 0
    // Predicated region
    $region18: #{tpu_custom_call.1} parent=1 // pred_check
      %p41 = pneg %p40
    $region19: #{tpu_custom_call.1} parent=1 // pred_check_branch
      %43 = sbr.rel (%p41) target = $region21
    $region20: #{tpu_custom_call.1} parent=1 // pred_region
      %vm44 = vcmask 0
      %45 = vst.msk [vmem:[#allocation2] sm:$0x1] %vm44, 0.0
    $region21: #{tpu_custom_call.1} parent=1 // pred_fallthru
      _
    %v46 = vld [vmem:[#allocation3] sm:$0xff]
    %v47 = vld [vmem:[#allocation3 + $0x8] sm:$0xff]
    %v48 = vld [vmem:[#allocation3 + $0x10] sm:$0xff]
    %v49 = vld [vmem:[#allocation3 + $0x18] sm:$0xff]
    %v50 = vld [vmem:[#allocation3 + $0x20] sm:$0xff]
    %v51 = vld [vmem:[#allocation3 + $0x28] sm:$0xff]
    %v52 = vld [vmem:[#allocation3 + $0x30] sm:$0xff]
    %v53 = vld [vmem:[#allocation3 + $0x38] sm:$0xff]
    %v54 = vld [vmem:[#allocation6] sm:$0xff]
    %v55 = vld [vmem:[#allocation6 + $0x8] sm:$0xff]
    %v56 = vld [vmem:[#allocation6 + $0x10] sm:$0xff]
    %v57 = vld [vmem:[#allocation6 + $0x18] sm:$0xff]
    %v58 = vld [vmem:[#allocation6 + $0x20] sm:$0xff]
    %v59 = vld [vmem:[#allocation6 + $0x28] sm:$0xff]
    %v60 = vld [vmem:[#allocation6 + $0x30] sm:$0xff]
    %v61 = vld [vmem:[#allocation6 + $0x38] sm:$0xff]
    %v62 = vlaneseq
    %v63 = vshrl.u32 %v62, 7
    %v64 = vadd.s32 %v63, 8
    %v65 = vadd.s32 %v63, 16
    %v66 = vadd.s32 %v63, 24
    %v67 = vadd.s32 %v63, 32
    %v68 = vadd.s32 %v63, 40
    %v69 = vadd.s32 %v63, 48
    %v70 = vadd.s32 %v63, 56
    %v71 = vlaneseq
    %v72 = vand.u32 %v71, 127
    %vm73 = vcmp.eq.s32.totalorder %v63, %v72
    %vm74 = vcmp.eq.s32.totalorder %v64, %v72
    %vm75 = vcmp.eq.s32.totalorder %v65, %v72
    %vm76 = vcmp.eq.s32.totalorder %v66, %v72
    %vm77 = vcmp.eq.s32.totalorder %v67, %v72
    %vm78 = vcmp.eq.s32.totalorder %v68, %v72
    %vm79 = vcmp.eq.s32.totalorder %v69, %v72
    %vm80 = vcmp.eq.s32.totalorder %v70, %v72
    %v81 = vsel %vm73, %v54, 0.0
    %v82 = vsel %vm74, %v55, 0.0
    %v83 = vsel %vm75, %v56, 0.0
    %v84 = vsel %vm76, %v57, 0.0
    %v85 = vsel %vm77, %v58, 0.0
    %v86 = vsel %vm78, %v59, 0.0
    %v87 = vsel %vm79, %v60, 0.0
    %v88 = vsel %vm80, %v61, 0.0
    %vm89 = vcmask 523264
    %v90 = vsel %vm89, %v81, 0.0
    %91 = vadd.xlane.f32.xlu0 %v90
    %v92 = vpop.xlane.xlu0 %91
    %v93 = vsel %vm89, %v82, 0.0
    %94 = vadd.xlane.f32.xlu0 %v93
    %v95 = vpop.xlane.xlu0 %94
    %v96 = vsel %vm89, %v83, 0.0
    %97 = vadd.xlane.f32.xlu0 %v96
    %v98 = vpop.xlane.xlu0 %97
    %v99 = vsel %vm89, %v84, 0.0
    %100 = vadd.xlane.f32.xlu0 %v99
    %v101 = vpop.xlane.xlu0 %100
    %v102 = vsel %vm89, %v85, 0.0
    %103 = vadd.xlane.f32.xlu0 %v102
    %v104 = vpop.xlane.xlu0 %103
    %v105 = vsel %vm89, %v86, 0.0
    %106 = vadd.xlane.f32.xlu0 %v105
    %v107 = vpop.xlane.xlu0 %106
    %v108 = vsel %vm89, %v87, 0.0
    %109 = vadd.xlane.f32.xlu0 %v108
    %v110 = vpop.xlane.xlu0 %109
    %v111 = vsel %vm89, %v88, 0.0
    %112 = vadd.xlane.f32.xlu0 %v111
    %v113 = vpop.xlane.xlu0 %112
    %v114 = vsub.f32 %v46, %v92
    %v115 = vsub.f32 %v47, %v95
    %v116 = vsub.f32 %v48, %v98
    %v117 = vsub.f32 %v49, %v101
    %v118 = vsub.f32 %v50, %v104
    %v119 = vsub.f32 %v51, %v107
    %v120 = vsub.f32 %v52, %v110
    %v121 = vsub.f32 %v53, %v113
    %v122 = vmul.f32 %v114, 0.5
    %v123 = vmul.f32 %v115, 0.5
    %v124 = vmul.f32 %v116, 0.5
    %v125 = vmul.f32 %v117, 0.5
    %v126 = vmul.f32 %v118, 0.5
    %v127 = vmul.f32 %v119, 0.5
    %v128 = vmul.f32 %v120, 0.5
    %v129 = vmul.f32 %v121, 0.5
    %v130 = vtanh.pop %v122
    %v131 = vtanh.pop %v123
    %v132 = vtanh.pop %v124
    %v133 = vtanh.pop %v125
    %v134 = vtanh.pop %v126
    %v135 = vtanh.pop %v127
    %v136 = vtanh.pop %v128
    %v137 = vtanh.pop %v129
    %v138 = vmul.f32 %v46, %v46
    %v139 = vmul.f32 %v47, %v47
    %v140 = vmul.f32 %v48, %v48
    %v141 = vmul.f32 %v49, %v49
    %v142 = vmul.f32 %v50, %v50
    %v143 = vmul.f32 %v51, %v51
    %v144 = vmul.f32 %v52, %v52
    %v145 = vmul.f32 %v53, %v53
    %v146 = vmul.f32 %v138, 0.5
    %v147 = vmul.f32 %v139, 0.5
    %v148 = vmul.f32 %v140, 0.5
    %v149 = vmul.f32 %v141, 0.5
    %v150 = vmul.f32 %v142, 0.5
    %v151 = vmul.f32 %v143, 0.5
    %v152 = vmul.f32 %v144, 0.5
    %v153 = vmul.f32 %v145, 0.5
    %v154 = vtanh.pop %v146
    %v155 = vtanh.pop %v147
    %v156 = vtanh.pop %v148
    %v157 = vtanh.pop %v149
    %v158 = vtanh.pop %v150
    %v159 = vtanh.pop %v151
    %v160 = vtanh.pop %v152
    %v161 = vtanh.pop %v153
    %v162 = vadd.f32 %v130, %v154
    %v163 = vadd.f32 %v131, %v155
    %v164 = vadd.f32 %v132, %v156
    %v165 = vadd.f32 %v133, %v157
    %v166 = vadd.f32 %v134, %v158
    %v167 = vadd.f32 %v135, %v159
    %v168 = vadd.f32 %v136, %v160
    %v169 = vadd.f32 %v137, %v161
    %v170 = vld [vmem:[#allocation2] sm:$0x1]
    %v171 = vsel %vm89, %v162, 0.0
    %v172 = vsel %vm89, %v163, 0.0
    %v173 = vadd.f32 %v171, %v172
    %v174 = vsel %vm89, %v164, 0.0
    %v175 = vadd.f32 %v173, %v174
    %v176 = vsel %vm89, %v165, 0.0
    %v177 = vadd.f32 %v175, %v176
    %v178 = vsel %vm89, %v166, 0.0
    %v179 = vadd.f32 %v177, %v178
    %v180 = vsel %vm89, %v167, 0.0
    %v181 = vadd.f32 %v179, %v180
    %v182 = vsel %vm89, %v168, 0.0
    %v183 = vadd.f32 %v181, %v182
    %v184 = vsel %vm89, %v169, 0.0
    %v185 = vadd.f32 %v183, %v184
    %186 = vadd.xlane.f32.xlu0 %v185
    %v187 = vpop.xlane.xlu0 %186
    %v188 = vrot.slane %v187, 4
    %v189 = vadd.f32 %v187, %v188
    %v190 = vrot.slane %v189, 2
    %v191 = vadd.f32 %v189, %v190
    %v192 = vrot.slane %v191, 1
    %v193 = vadd.f32 %v191, %v192
    %s194 = vtos %v193
    %v195 = vstv %s194
    %v196 = vadd.f32 %v170, %v195
    %vm197 = vcmask 0
    %198 = vst.msk [vmem:[#allocation2] sm:$0x1] %vm197, %v196
    // Predicated region
    $region22: #{tpu_custom_call.1} parent=1 // pred_check
      %p199 = pneg %p40
    $region23: #{tpu_custom_call.1} parent=1 // pred_check_branch
      %201 = sbr.rel (%p199) target = $region25
    $region24: #{tpu_custom_call.1} parent=1 // pred_region
      %v202 = vld [vmem:[#allocation2] sm:$0x1]
      %v203 = vmul.f32 %v202, 0.00012207031
      %v204 = vadd.f32 %v203, 1.0
      %205 = vst.msk [vmem:[#allocation8] sm:$0x1] %vm197, %v204
    $region25: #{tpu_custom_call.1} parent=1 // pred_fallthru
      _
    // Predicated region
    $region26: #{tpu_custom_call.1} parent=1 // pred_check
      _
    $region27: #{tpu_custom_call.1} parent=1 // pred_check_branch
      %207 = sbr.rel (0) target = $region29
    $region28: #{tpu_custom_call.1} parent=1 // pred_region
      %s209 = ssub.s32 16, 16
      %210 = vsyncadd [#allocation5], %s209
      %s212 = sshll.u32 [#allocation8], 4
      %s213 = int_to_ptr.vmem [resolvable:$true] %s212
      %215 = dma.vmem_to_hbm [thread:$0]  %s213, 16, %s2, [#allocation5]
    $region29: #{tpu_custom_call.1} parent=1 // pred_fallthru
      _
    // Predicated region
    $region30: #{tpu_custom_call.1} parent=1 // pred_check
      _
    $region31: #{tpu_custom_call.1} parent=1 // pred_check_branch
      %217 = sbr.rel (0) target = $region33
    $region32: #{tpu_custom_call.1} parent=1 // pred_region
      %218 = dma.done [#allocation5], 16
    $region33: #{tpu_custom_call.1} parent=1 // pred_fallthru
      _
    %219 = vsyncpa [#allocation4], 1
    %220 = vsyncpa [#allocation7], 1
    %221 = vsyncpa [#allocation5], 1

</llo_original>
